<compile_context>
chip_gen: v6e
topology: v6e:2x2x1
jax: 0.10.0
libtpu: 0.0.40
codegen_flags: <defaults>
</compile_context>

<pallas_src>
import functools

import jax
import jax.numpy as jnp
from jax.experimental import pallas as pl
from jax.experimental.pallas import tpu as pltpu

EPS = 1e-5
NEG_SLOPE = 0.1

IN_DIM = 100   # logical input features
IN_PAD = 128   # lane-padded input features
H1 = 300       # logical hidden 1
H1P = 384      # lane-padded hidden 1
H2 = 100       # logical hidden 2
H2P = 128      # lane-padded hidden 2
OUTP = 128     # lane-padded final-layer width


def _classifier_kernel(x_ref, wa_ref, wb_ref, pp_ref, o_ref, *, num_out):
    def bn_lrelu(y, gamma, beta):
        # Training-mode BatchNorm1d.  var = E[y^2] - mean^2: two independent
        # reduces (shorter dependence chain than reduce -> sub -> reduce).
        # Theoretical cancellation risk is a non-issue in f32 at these O(1)
        # magnitudes.
        mean = jnp.mean(y, axis=0, keepdims=True)
        var = jnp.mean(y * y, axis=0, keepdims=True) - mean * mean
        scale = gamma * jax.lax.rsqrt(var + EPS)     # gamma folded into scale
        shift = beta - mean * scale                  # [1,F]; one FMA on [B,F]
        y = y * scale + shift
        return jnp.where(y > 0, y, NEG_SLOPE * y)    # LeakyReLU(0.1)

    # Zero-extend x from 100 -> 128 lanes in-kernel (weight rows 100:128 are
    # zero as well), then feed the MXU bf16 operands with f32 accumulation.
    x = x_ref[...]
    x = jnp.concatenate(
        [x, jnp.zeros((x.shape[0], IN_PAD - IN_DIM), x.dtype)], axis=1)
    x = x.astype(jnp.bfloat16)

    # Layer 1: Linear(100,300) (bias dropped: cancelled by BN mean) + BN + LReLU
    y1 = jnp.dot(x, wa_ref[...], preferred_element_type=jnp.float32)
    h1 = bn_lrelu(y1, pp_ref[0:1, 0:H1P], pp_ref[1:2, 0:H1P])

    # Layer 2: Linear(300,100) + BN + LReLU          (w2 = wb rows [0:384))
    y2 = jnp.dot(h1.astype(jnp.bfloat16), wb_ref[0:H1P, :],
                 preferred_element_type=jnp.float32)
    h2 = bn_lrelu(y2, pp_ref[0:1, H1P:H1P + H2P], pp_ref[1:2, H1P:H1P + H2P])

    # Layer 3: Linear(100, num_latent_dim) + bias    (w3 = wb rows [384:512))
    y3 = jnp.dot(h2.astype(jnp.bfloat16), wb_ref[H1P:H1P + H2P, :],
                 preferred_element_type=jnp.float32)
    y3 = y3 + pp_ref[0:1, H1P + H2P:H1P + H2P + OUTP]
    o_ref[...] = y3[:, :num_out]


def classifier_forward(x, params):
    """x: [B, 100] float32. Returns [B, num_latent_dim] float32."""
    B = x.shape[0]
    nl = int(params["num_latent_dim"])
    operands = (x.astype(jnp.float32), params["wa"], params["wb"], params["pp"])
    vmem = pl.BlockSpec(memory_space=pltpu.MemorySpace.VMEM)

    flops = 2 * B * (IN_PAD * H1P + H1P * H2P + H2P * OUTP)
    bytes_accessed = sum(int(a.size) * a.dtype.itemsize for a in operands)
    bytes_accessed += B * nl * 4

    return pl.pallas_call(
        functools.partial(_classifier_kernel, num_out=nl),
        out_shape=jax.ShapeDtypeStruct((B, nl), jnp.float32),
        in_specs=[vmem] * len(operands),
        out_specs=vmem,
        cost_estimate=pl.CostEstimate(flops=int(flops),
                                      transcendentals=H1P + H2P,
                                      bytes_accessed=int(bytes_accessed)),
    )(*operands)


def init_params(key, num_latent_dim):
    """Synthetic parameters matching the PyTorch module shapes.

    Kernel operands (weights pre-transposed to [in, out], zero-padded to lane
    multiples of 128, stored bf16):
      wa : [128, 384]  bf16   -- w1
      wb : [512, 128]  bf16   -- rows 0:384 = w2 (padded), rows 384:512 = w3
      pp : [2, 640]    f32    -- row0 = [gamma1 | gamma2 | b3], row1 = [beta1 | beta2 | 0]
    A parallel unpadded f32 copy lives under params["ref"] for the pure-JAX
    reference (it also carries the b1/b2 biases the kernel legitimately drops).
    """
    sizes = [(IN_DIM, H1), (H1, H2), (H2, num_latent_dim)]
    ref = {}
    ws = []
    for i, (fin, fout) in enumerate(sizes, start=1):
        key, kw, kb, kg, kbe = jax.random.split(key, 5)
        bound = 1.0 / float(fin) ** 0.5
        w = jax.random.uniform(kw, (fin, fout), jnp.float32, -bound, bound)
        b = jax.random.uniform(kb, (fout,), jnp.float32, -bound, bound)
        # Round weights through bf16 once so kernel (bf16 storage) and the f32
        # reference see numerically identical weight values.
        w_bf16 = w.astype(jnp.bfloat16)
        ref[f"w{i}"] = w_bf16.astype(jnp.float32)
        ref[f"b{i}"] = b
        ws.append(w_bf16)
        if i < 3:
            # BatchNorm affine params (randomized to exercise the affine path;
            # a fresh PyTorch module would have gamma=1, beta=0).
            gamma = 1.0 + 0.1 * jax.random.uniform(kg, (fout,), jnp.float32, -1.0, 1.0)
            beta = 0.1 * jax.random.uniform(kbe, (fout,), jnp.float32, -1.0, 1.0)
            ref[f"g{i}"] = gamma
            ref[f"be{i}"] = beta

    wa = jnp.zeros((IN_PAD, H1P), jnp.bfloat16).at[:IN_DIM, :H1].set(ws[0])
    wb = (jnp.zeros((H1P + H2P, H2P), jnp.bfloat16)
          .at[:H1, :H2].set(ws[1])                           # w2
          .at[H1P:H1P + H2, :num_latent_dim].set(ws[2]))     # w3
    pp = (jnp.zeros((2, H1P + H2P + OUTP), jnp.float32)
          .at[0, :H1].set(ref["g1"])
          .at[1, :H1].set(ref["be1"])
          .at[0, H1P:H1P + H2].set(ref["g2"])
          .at[1, H1P:H1P + H2].set(ref["be2"])
          .at[0, H1P + H2P:H1P + H2P + num_latent_dim].set(ref["b3"]))

    return {"num_latent_dim": num_latent_dim, "wa": wa, "wb": wb, "pp": pp,
            "ref": ref}


def _reference_forward(x, ref):
    """Pure-JAX f32 reference mirroring the PyTorch module (training-mode BN)."""
    h = x
    for i in (1, 2):
        y = h @ ref[f"w{i}"] + ref[f"b{i}"]
        mean = jnp.mean(y, axis=0, keepdims=True)
        var = jnp.mean((y - mean) ** 2, axis=0, keepdims=True)
        y = (y - mean) / jnp.sqrt(var + EPS) * ref[f"g{i}"] + ref[f"be{i}"]
        h = jnp.where(y > 0, y, NEG_SLOPE * y)
    return h @ ref["w3"] + ref["b3"]


if __name__ == "__main__":
    num_latent_dim = 20   # the `num_latent_dim` ctor argument
    batch = 8             # training-mode BatchNorm1d needs batch > 1

    key = jax.random.PRNGKey(0)
    key, kx = jax.random.split(key)
    x = jax.random.normal(kx, (batch, IN_DIM), jnp.float32)
    params = init_params(key, num_latent_dim)

    out = jax.block_until_ready(classifier_forward(x, params))
    ref_out = _reference_forward(x, params["ref"])

    assert out.shape == (batch, num_latent_dim), out.shape
    # bf16 activations feeding the MXU introduce ~0.3-1% rounding relative to
    # the pure-f32 reference; tolerance relaxed accordingly (real bugs show up
    # as O(0.1)-O(1) errors and are still caught).
    err = float(jnp.max(jnp.abs(out - ref_out)))
    assert jnp.allclose(out, ref_out, atol=5e-2, rtol=5e-2), (
        "mismatch vs reference, max abs err = %e" % err)

    print("KERNEL_OK")
</pallas_src>

<mosaic_0001>
module attributes {stable_mosaic.version = 11 : i64} {
  func.func @_classifier_kernel(%arg0: memref<8x100xf32, #tpu.memory_space<vmem>>, %arg1: memref<128x384xbf16, #tpu.memory_space<vmem>>, %arg2: memref<512x128xbf16, #tpu.memory_space<vmem>>, %arg3: memref<2x640xf32, #tpu.memory_space<vmem>>, %arg4: memref<8x20xf32, #tpu.memory_space<vmem>>) attributes {dimension_semantics = [], scalar_prefetch = 0 : i64, scratch_operands = 0 : i64, tpu.core_type = #tpu.core_type<tc>} {
    %c0 = arith.constant 0 : index
    %c0_0 = arith.constant 0 : index
    %0 = vector.load %arg0[%c0, %c0_0] : memref<8x100xf32, #tpu.memory_space<vmem>>, vector<8x100xf32>
    %cst = arith.constant 0.000000e+00 : f32
    %1 = vector.broadcast %cst : f32 to vector<8x28xf32>
    %2 = tpu.concatenate %0, %1 in 1 : vector<8x100xf32>, vector<8x28xf32> -> vector<8x128xf32>
    %3 = arith.truncf %2 : vector<8x128xf32> to vector<8x128xbf16>
    %c0_1 = arith.constant 0 : index
    %c0_2 = arith.constant 0 : index
    %4 = vector.load %arg1[%c0_1, %c0_2] : memref<128x384xbf16, #tpu.memory_space<vmem>>, vector<128x384xbf16>
    %cst_3 = arith.constant dense<0.000000e+00> : vector<8x384xf32>
    %5 = tpu.matmul %3, %4, %cst_3 {dimension_numbers = #tpu.dot_dimension_numbers<[1], [0], [0], [1], [0, 0, 1, 1], [], []>} : vector<8x128xbf16>, vector<128x384xbf16>, vector<8x384xf32> -> vector<8x384xf32>
    %c0_4 = arith.constant 0 : index
    %c0_5 = arith.constant 0 : index
    %6 = vector.load %arg3[%c0_4, %c0_5] : memref<2x640xf32, #tpu.memory_space<vmem>>, vector<1x384xf32>
    %c1 = arith.constant 1 : index
    %c0_6 = arith.constant 0 : index
    %7 = vector.load %arg3[%c1, %c0_6] : memref<2x640xf32, #tpu.memory_space<vmem>>, vector<1x384xf32>
    %cst_7 = arith.constant dense<0.000000e+00> : vector<384xf32>
    %8 = vector.multi_reduction <add>, %5, %cst_7 [0] : vector<8x384xf32> to vector<384xf32>
    %9 = vector.shape_cast %8 : vector<384xf32> to vector<1x384xf32>
    %cst_8 = arith.constant 8.000000e+00 : f32
    %10 = vector.broadcast %cst_8 : f32 to vector<1x384xf32>
    %11 = arith.divf %9, %10 : vector<1x384xf32>
    %12 = arith.mulf %5, %5 : vector<8x384xf32>
    %cst_9 = arith.constant dense<0.000000e+00> : vector<384xf32>
    %13 = vector.multi_reduction <add>, %12, %cst_9 [0] : vector<8x384xf32> to vector<384xf32>
    %14 = vector.shape_cast %13 : vector<384xf32> to vector<1x384xf32>
    %cst_10 = arith.constant 8.000000e+00 : f32
    %15 = vector.broadcast %cst_10 : f32 to vector<1x384xf32>
    %16 = arith.divf %14, %15 : vector<1x384xf32>
    %17 = arith.mulf %11, %11 : vector<1x384xf32>
    %18 = arith.subf %16, %17 : vector<1x384xf32>
    %cst_11 = arith.constant 9.99999974E-6 : f32
    %19 = vector.broadcast %cst_11 : f32 to vector<1x384xf32>
    %20 = arith.addf %18, %19 : vector<1x384xf32>
    %21 = math.rsqrt %20 : vector<1x384xf32>
    %22 = arith.mulf %6, %21 : vector<1x384xf32>
    %23 = arith.mulf %11, %22 : vector<1x384xf32>
    %24 = arith.subf %7, %23 : vector<1x384xf32>
    %25 = vector.broadcast %22 : vector<1x384xf32> to vector<8x384xf32>
    %26 = arith.mulf %5, %25 : vector<8x384xf32>
    %27 = vector.broadcast %24 : vector<1x384xf32> to vector<8x384xf32>
    %28 = arith.addf %26, %27 : vector<8x384xf32>
    %cst_12 = arith.constant 0.000000e+00 : f32
    %29 = vector.broadcast %cst_12 : f32 to vector<8x384xf32>
    %30 = arith.cmpf ogt, %28, %29 : vector<8x384xf32>
    %cst_13 = arith.constant 1.000000e-01 : f32
    %31 = vector.broadcast %cst_13 : f32 to vector<8x384xf32>
    %32 = arith.mulf %31, %28 : vector<8x384xf32>
    %33 = arith.select %30, %28, %32 : vector<8x384xi1>, vector<8x384xf32>
    %34 = arith.truncf %33 : vector<8x384xf32> to vector<8x384xbf16>
    %c0_14 = arith.constant 0 : index
    %c0_15 = arith.constant 0 : index
    %35 = vector.load %arg2[%c0_14, %c0_15] : memref<512x128xbf16, #tpu.memory_space<vmem>>, vector<384x128xbf16>
    %cst_16 = arith.constant dense<0.000000e+00> : vector<8x128xf32>
    %36 = tpu.matmul %34, %35, %cst_16 {dimension_numbers = #tpu.dot_dimension_numbers<[1], [0], [0], [1], [0, 0, 1, 1], [], []>} : vector<8x384xbf16>, vector<384x128xbf16>, vector<8x128xf32> -> vector<8x128xf32>
    %c0_17 = arith.constant 0 : index
    %c384 = arith.constant 384 : index
    %37 = vector.load %arg3[%c0_17, %c384] : memref<2x640xf32, #tpu.memory_space<vmem>>, vector<1x128xf32>
    %c1_18 = arith.constant 1 : index
    %c384_19 = arith.constant 384 : index
    %38 = vector.load %arg3[%c1_18, %c384_19] : memref<2x640xf32, #tpu.memory_space<vmem>>, vector<1x128xf32>
    %cst_20 = arith.constant dense<0.000000e+00> : vector<128xf32>
    %39 = vector.multi_reduction <add>, %36, %cst_20 [0] : vector<8x128xf32> to vector<128xf32>
    %40 = vector.shape_cast %39 : vector<128xf32> to vector<1x128xf32>
    %cst_21 = arith.constant 8.000000e+00 : f32
    %41 = vector.broadcast %cst_21 : f32 to vector<1x128xf32>
    %42 = arith.divf %40, %41 : vector<1x128xf32>
    %43 = arith.mulf %36, %36 : vector<8x128xf32>
    %cst_22 = arith.constant dense<0.000000e+00> : vector<128xf32>
    %44 = vector.multi_reduction <add>, %43, %cst_22 [0] : vector<8x128xf32> to vector<128xf32>
    %45 = vector.shape_cast %44 : vector<128xf32> to vector<1x128xf32>
    %cst_23 = arith.constant 8.000000e+00 : f32
    %46 = vector.broadcast %cst_23 : f32 to vector<1x128xf32>
    %47 = arith.divf %45, %46 : vector<1x128xf32>
    %48 = arith.mulf %42, %42 : vector<1x128xf32>
    %49 = arith.subf %47, %48 : vector<1x128xf32>
    %cst_24 = arith.constant 9.99999974E-6 : f32
    %50 = vector.broadcast %cst_24 : f32 to vector<1x128xf32>
    %51 = arith.addf %49, %50 : vector<1x128xf32>
    %52 = math.rsqrt %51 : vector<1x128xf32>
    %53 = arith.mulf %37, %52 : vector<1x128xf32>
    %54 = arith.mulf %42, %53 : vector<1x128xf32>
    %55 = arith.subf %38, %54 : vector<1x128xf32>
    %56 = vector.broadcast %53 : vector<1x128xf32> to vector<8x128xf32>
    %57 = arith.mulf %36, %56 : vector<8x128xf32>
    %58 = vector.broadcast %55 : vector<1x128xf32> to vector<8x128xf32>
    %59 = arith.addf %57, %58 : vector<8x128xf32>
    %cst_25 = arith.constant 0.000000e+00 : f32
    %60 = vector.broadcast %cst_25 : f32 to vector<8x128xf32>
    %61 = arith.cmpf ogt, %59, %60 : vector<8x128xf32>
    %cst_26 = arith.constant 1.000000e-01 : f32
    %62 = vector.broadcast %cst_26 : f32 to vector<8x128xf32>
    %63 = arith.mulf %62, %59 : vector<8x128xf32>
    %64 = arith.select %61, %59, %63 : vector<8x128xi1>, vector<8x128xf32>
    %65 = arith.truncf %64 : vector<8x128xf32> to vector<8x128xbf16>
    %c384_27 = arith.constant 384 : index
    %c0_28 = arith.constant 0 : index
    %66 = vector.load %arg2[%c384_27, %c0_28] : memref<512x128xbf16, #tpu.memory_space<vmem>>, vector<128x128xbf16>
    %cst_29 = arith.constant dense<0.000000e+00> : vector<8x128xf32>
    %67 = tpu.matmul %65, %66, %cst_29 {dimension_numbers = #tpu.dot_dimension_numbers<[1], [0], [0], [1], [0, 0, 1, 1], [], []>} : vector<8x128xbf16>, vector<128x128xbf16>, vector<8x128xf32> -> vector<8x128xf32>
    %c0_30 = arith.constant 0 : index
    %c512 = arith.constant 512 : index
    %68 = vector.load %arg3[%c0_30, %c512] : memref<2x640xf32, #tpu.memory_space<vmem>>, vector<1x128xf32>
    %69 = vector.broadcast %68 : vector<1x128xf32> to vector<8x128xf32>
    %70 = arith.addf %67, %69 : vector<8x128xf32>
    %71 = vector.extract_strided_slice %70 {offsets = [0, 0], sizes = [8, 20], strides = [1, 1]} : vector<8x128xf32> to vector<8x20xf32>
    %c0_31 = arith.constant 0 : index
    %c0_32 = arith.constant 0 : index
    %72 = vector.load %arg4[%c0_31, %c0_32] : memref<8x20xf32, #tpu.memory_space<vmem>>, vector<8x20xf32>
    tpu.vector_store %arg4[%c0_31, %c0_32], %71 {strides = array<i32>} : memref<8x20xf32, #tpu.memory_space<vmem>>, vector<8x20xf32>,
    return
  }
}

</mosaic_0001>

<llo_original>
// kernel: tpu_custom_call.1
$region0: #{tpu_custom_call.1}
  #allocation0 [shape = 'u32[]', space=smem, size = 0x4, offset = 0x4, fixed_abs, tag = 'smem constant byte address 0x4 - core index']
  #allocation1 [shape = 'u32[144,128]{1,0:T(1,128)}', space=vmem, size = 0x12000, scoped, tag = 'internal scratch']
  %s0 = inlined_call_operand.hbm [shape: f32[8,100], index: 0, kind: input, shape index: {}]
  %s1 = inlined_call_operand.hbm [shape: bf16[128,384], index: 1, kind: input, shape index: {}]
  %s2 = inlined_call_operand.hbm [shape: bf16[512,128], index: 2, kind: input, shape index: {}]
  %s3 = inlined_call_operand.hbm [shape: f32[2,640], index: 3, kind: input, shape index: {}]
  %s4 = inlined_call_operand.hbm [shape: f32[8,20], index: 4, kind: output, shape index: {}]
  %s5 = sld [smem:[#allocation0]]
  $region42: #{tpu_custom_call.1} parent=0
    _
  %s7 = ssub.s32 1, %s5
  %s8 = scalar_select 0, %s7, %s5
  $region1: #{tpu_custom_call.1} parent=0
    #allocation2 [shape = 'u8[4096]{0}', space=vmem, size = 0x1000, scoped, tag = 'input window, operand 0, single buffered']
    #allocation3 [shape = 's32[1]{0}', space=sflag, size = 0x4, scoped, tag = 'scoped memory for tpu_custom_call.1']
    #allocation4 [shape = 's32[1]{0}', space=sflag, size = 0x4, scoped, tag = 'scoped memory for tpu_custom_call.1']
    #allocation5 [shape = 'u8[98304]{0}', space=vmem, size = 0x18000, scoped, tag = 'input window, operand 1, single buffered']
    #allocation6 [shape = 's32[1]{0}', space=sflag, size = 0x4, scoped, tag = 'scoped memory for tpu_custom_call.1']
    #allocation7 [shape = 'u8[131072]{0}', space=vmem, size = 0x20000, scoped, tag = 'input window, operand 2, single buffered']
    #allocation8 [shape = 'u8[5120]{0}', space=vmem, size = 0x1400, scoped, tag = 'input window, operand 3, single buffered']
    #allocation9 [shape = 's32[1]{0}', space=sflag, size = 0x4, scoped, tag = 'scoped memory for tpu_custom_call.1']
    #allocation10 [shape = 'u8[4096]{0}', space=vmem, size = 0x1000, scoped, tag = 'output window, operand 0, single buffered']
    %9 = vsyncpa [#allocation3], 0
    %10 = vsyncpa [#allocation6], 0
    %11 = vsyncpa [#allocation9], 0
    %12 = vsyncpa [#allocation4], 0
    // Predicated region
    $region2: #{tpu_custom_call.1} parent=1 // pred_check
      _
    $region3: #{tpu_custom_call.1} parent=1 // pred_check_branch
      %14 = sbr.rel (0) target = $region5
    $region4: #{tpu_custom_call.1} parent=1 // pred_region
      %s16 = ssub.s32 128, 128
      %17 = vsyncadd [#allocation3], %s16
      %s19 = sshll.u32 [#allocation2], 4
      %s20 = int_to_ptr.vmem [resolvable:$true] %s19
      %22 = dma.hbm_to_vmem [thread:$0]  %s0, 128, %s20, [#allocation3]
    $region5: #{tpu_custom_call.1} parent=1 // pred_fallthru
      _
    // Predicated region
    $region6: #{tpu_custom_call.1} parent=1 // pred_check
      _
    $region7: #{tpu_custom_call.1} parent=1 // pred_check_branch
      %24 = sbr.rel (0) target = $region9
    $region8: #{tpu_custom_call.1} parent=1 // pred_region
      %s26 = ssub.s32 3072, 3072
      %27 = vsyncadd [#allocation6], %s26
      %s28 = sshll.u32 [#allocation5], 4
      %s29 = int_to_ptr.vmem [resolvable:$true] %s28
      %34 = dma.hbm_to_vmem [thread:$0]  %s1, 3072, %s29, [#allocation6], 192, 192, 12
    $region9: #{tpu_custom_call.1} parent=1 // pred_fallthru
      _
    // Predicated region
    $region10: #{tpu_custom_call.1} parent=1 // pred_check
      _
    $region11: #{tpu_custom_call.1} parent=1 // pred_check_branch
      %36 = sbr.rel (0) target = $region13
    $region12: #{tpu_custom_call.1} parent=1 // pred_region
      %s38 = ssub.s32 4096, 4096
      %39 = vsyncadd [#allocation6], %s38
      %s40 = sshll.u32 [#allocation7], 4
      %s41 = int_to_ptr.vmem [resolvable:$true] %s40
      %46 = dma.hbm_to_vmem [thread:$0]  %s2, 4096, %s41, [#allocation6], 64, 64, 4
    $region13: #{tpu_custom_call.1} parent=1 // pred_fallthru
      _
    // Predicated region
    $region14: #{tpu_custom_call.1} parent=1 // pred_check
      _
    $region15: #{tpu_custom_call.1} parent=1 // pred_check_branch
      %48 = sbr.rel (0) target = $region17
    $region16: #{tpu_custom_call.1} parent=1 // pred_region
      %s50 = ssub.s32 160, 160
      %51 = vsyncadd [#allocation9], %s50
      %s53 = sshll.u32 [#allocation8], 4
      %s54 = int_to_ptr.vmem [resolvable:$true] %s53
      %56 = dma.hbm_to_vmem [thread:$0]  %s3, 160, %s54, [#allocation9]
    $region17: #{tpu_custom_call.1} parent=1 // pred_fallthru
      _
    // Predicated region
    $region18: #{tpu_custom_call.1} parent=1 // pred_check
      _
    $region19: #{tpu_custom_call.1} parent=1 // pred_check_branch
      %58 = sbr.rel (0) target = $region21
    $region20: #{tpu_custom_call.1} parent=1 // pred_region
      %59 = dma.done [#allocation3], 128
    $region21: #{tpu_custom_call.1} parent=1 // pred_fallthru
      _
    // Predicated region
    $region22: #{tpu_custom_call.1} parent=1 // pred_check
      _
    $region23: #{tpu_custom_call.1} parent=1 // pred_check_branch
      %61 = sbr.rel (0) target = $region25
    $region24: #{tpu_custom_call.1} parent=1 // pred_region
      %62 = dma.done [#allocation6], 3072
    $region25: #{tpu_custom_call.1} parent=1 // pred_fallthru
      _
    // Predicated region
    $region26: #{tpu_custom_call.1} parent=1 // pred_check
      _
    $region27: #{tpu_custom_call.1} parent=1 // pred_check_branch
      %64 = sbr.rel (0) target = $region29
    $region28: #{tpu_custom_call.1} parent=1 // pred_region
      %65 = dma.done [#allocation6], 4096
    $region29: #{tpu_custom_call.1} parent=1 // pred_fallthru
      _
    // Predicated region
    $region30: #{tpu_custom_call.1} parent=1 // pred_check
      _
    $region31: #{tpu_custom_call.1} parent=1 // pred_check_branch
      %67 = sbr.rel (0) target = $region33
    $region32: #{tpu_custom_call.1} parent=1 // pred_region
      %68 = dma.done [#allocation9], 160
    $region33: #{tpu_custom_call.1} parent=1 // pred_fallthru
      _
    %v70 = vld [vmem:[#allocation2] sm:$0xff]
    %vm71 = vcmask 818176
    %v72 = vsel %vm71, %v70, 0.0
    %v73 = vpack.c.bf16 %v72, %v72
    %v74 = vld [vmem:[#allocation5] sm:$0xff]
    %v75 = vld [vmem:[#allocation5 + $0x8] sm:$0xf]
    %v76 = vld [vmem:[#allocation5 + $0xc] sm:$0xff]
    %v77 = vld [vmem:[#allocation5 + $0x14] sm:$0xf]
    %v78 = vld [vmem:[#allocation5 + $0x18] sm:$0xff]
    %v79 = vld [vmem:[#allocation5 + $0x20] sm:$0xf]
    %v80 = vld [vmem:[#allocation5 + $0x24] sm:$0xff]
    %v81 = vld [vmem:[#allocation5 + $0x2c] sm:$0xf]
    %v82 = vld [vmem:[#allocation5 + $0x30] sm:$0xff]
    %v83 = vld [vmem:[#allocation5 + $0x38] sm:$0xf]
    %v84 = vld [vmem:[#allocation5 + $0x3c] sm:$0xff]
    %v85 = vld [vmem:[#allocation5 + $0x44] sm:$0xf]
    %v86 = vld [vmem:[#allocation5 + $0x48] sm:$0xff]
    %v87 = vld [vmem:[#allocation5 + $0x50] sm:$0xf]
    %v88 = vld [vmem:[#allocation5 + $0x54] sm:$0xff]
    %v89 = vld [vmem:[#allocation5 + $0x5c] sm:$0xf]
    %v90 = vld [vmem:[#allocation5 + $0x60] sm:$0xff]
    %v91 = vld [vmem:[#allocation5 + $0x68] sm:$0xf]
    %v92 = vld [vmem:[#allocation5 + $0x6c] sm:$0xff]
    %v93 = vld [vmem:[#allocation5 + $0x74] sm:$0xf]
    %v94 = vld [vmem:[#allocation5 + $0x78] sm:$0xff]
    %v95 = vld [vmem:[#allocation5 + $0x80] sm:$0xf]
    %v96 = vld [vmem:[#allocation5 + $0x84] sm:$0xff]
    %v97 = vld [vmem:[#allocation5 + $0x8c] sm:$0xf]
    %v98 = vld [vmem:[#allocation5 + $0x90] sm:$0xff]
    %v99 = vld [vmem:[#allocation5 + $0x98] sm:$0xf]
    %v100 = vld [vmem:[#allocation5 + $0x9c] sm:$0xff]
    %v101 = vld [vmem:[#allocation5 + $0xa4] sm:$0xf]
    %v102 = vld [vmem:[#allocation5 + $0xa8] sm:$0xff]
    %v103 = vld [vmem:[#allocation5 + $0xb0] sm:$0xf]
    %v104 = vld [vmem:[#allocation5 + $0xb4] sm:$0xff]
    %v105 = vld [vmem:[#allocation5 + $0xbc] sm:$0xf]
    %v138 = vunpack.c.l.b16 %v74
    %v139 = vunpack.c.h.b16 %v74
    %v140 = vunpack.c.l.b16 %v75
    %v141 = vunpack.c.l.b16 %v76
    %v142 = vunpack.c.h.b16 %v76
    %v143 = vunpack.c.l.b16 %v77
    %v144 = vunpack.c.l.b16 %v78
    %v145 = vunpack.c.h.b16 %v78
    %v146 = vunpack.c.l.b16 %v79
    %v147 = vunpack.c.l.b16 %v80
    %v148 = vunpack.c.h.b16 %v80
    %v149 = vunpack.c.l.b16 %v81
    %v150 = vunpack.c.l.b16 %v82
    %v151 = vunpack.c.h.b16 %v82
    %v152 = vunpack.c.l.b16 %v83
    %v153 = vunpack.c.l.b16 %v84
    %v154 = vunpack.c.h.b16 %v84
    %v155 = vunpack.c.l.b16 %v85
    %v156 = vunpack.c.l.b16 %v86
    %v157 = vunpack.c.h.b16 %v86
    %v158 = vunpack.c.l.b16 %v87
    %v159 = vunpack.c.l.b16 %v88
    %v160 = vunpack.c.h.b16 %v88
    %v161 = vunpack.c.l.b16 %v89
    %v162 = vunpack.c.l.b16 %v90
    %v163 = vunpack.c.h.b16 %v90
    %v164 = vunpack.c.l.b16 %v91
    %v165 = vunpack.c.l.b16 %v92
    %v166 = vunpack.c.h.b16 %v92
    %v167 = vunpack.c.l.b16 %v93
    %v168 = vunpack.c.l.b16 %v94
    %v169 = vunpack.c.h.b16 %v94
    %v170 = vunpack.c.l.b16 %v95
    %v171 = vunpack.c.l.b16 %v96
    %v172 = vunpack.c.h.b16 %v96
    %v173 = vunpack.c.l.b16 %v97
    %v174 = vunpack.c.l.b16 %v98
    %v175 = vunpack.c.h.b16 %v98
    %v176 = vunpack.c.l.b16 %v99
    %v177 = vunpack.c.l.b16 %v100
    %v178 = vunpack.c.h.b16 %v100
    %v179 = vunpack.c.l.b16 %v101
    %v180 = vunpack.c.l.b16 %v102
    %v181 = vunpack.c.h.b16 %v102
    %v182 = vunpack.c.l.b16 %v103
    %v183 = vunpack.c.l.b16 %v104
    %v184 = vunpack.c.h.b16 %v104
    %v185 = vunpack.c.l.b16 %v105
    %v186 = vpack.c.b16 %v141, %v138
    %v187 = vpack.c.b16 %v142, %v139
    %v188 = vpack.c.b16 %v143, %v140
    %v189 = vpack.c.b16 %v147, %v144
    %v190 = vpack.c.b16 %v148, %v145
    %v191 = vpack.c.b16 %v149, %v146
    %v192 = vpack.c.b16 %v153, %v150
    %v193 = vpack.c.b16 %v154, %v151
    %v194 = vpack.c.b16 %v155, %v152
    %v195 = vpack.c.b16 %v159, %v156
    %v196 = vpack.c.b16 %v160, %v157
    %v197 = vpack.c.b16 %v161, %v158
    %v198 = vpack.c.b16 %v165, %v162
    %v199 = vpack.c.b16 %v166, %v163
    %v200 = vpack.c.b16 %v167, %v164
    %v201 = vpack.c.b16 %v171, %v168
    %v202 = vpack.c.b16 %v172, %v169
    %v203 = vpack.c.b16 %v173, %v170
    %v204 = vpack.c.b16 %v177, %v174
    %v205 = vpack.c.b16 %v178, %v175
    %v206 = vpack.c.b16 %v179, %v176
    %v207 = vpack.c.b16 %v183, %v180
    %v208 = vpack.c.b16 %v184, %v181
    %v209 = vpack.c.b16 %v185, %v182
    %234 = vmatprep.subr.bf16.mxu0 %v208
    %235 = vmatpush1.bf16.msra.mxu0 %v207
    %236 = vmatprep.subr.bf16.mxu0 %v205
    %237 = vmatpush1.bf16.msra.mxu0 %v204
    %238 = vmatprep.subr.bf16.mxu0 %v202
    %239 = vmatpush1.bf16.msra.mxu0 %v201
    %240 = vmatprep.subr.bf16.mxu0 %v199
    %241 = vmatpush1.bf16.msra.mxu0 %v198
    %242 = vmatprep.subr.bf16.mxu0 %v196
    %243 = vmatpush1.bf16.msra.mxu0 %v195
    %244 = vmatprep.subr.bf16.mxu0 %v193
    %245 = vmatpush1.bf16.msra.mxu0 %v192
    %246 = vmatprep.subr.bf16.mxu0 %v190
    %247 = vmatpush1.bf16.msra.mxu0 %v189
    %248 = vmatprep.subr.bf16.mxu0 %v187
    %249 = vmatpush1.bf16.msra.mxu0 %v186
    %250 = vmatprep.subr.bf16.mxu0 0
    %251 = vmatpush2.bf16.msra.mxu0 0
    %252 = vmatprep.subr.bf16.mxu0 0
    %253 = vmatpush2.bf16.msra.mxu0 0
    %254 = vmatprep.subr.bf16.mxu0 0
    %255 = vmatpush2.bf16.msra.mxu0 0
    %256 = vmatprep.subr.bf16.mxu0 0
    %257 = vmatpush2.bf16.msra.mxu0 0
    %258 = vmatprep.subr.bf16.mxu0 0
    %259 = vmatpush2.bf16.msra.mxu0 0
    %260 = vmatprep.subr.bf16.mxu0 0
    %261 = vmatpush2.bf16.msra.mxu0 0
    %262 = vmatprep.subr.bf16.mxu0 0
    %263 = vmatpush2.bf16.msra.mxu0 0
    %264 = vmatprep.subr.bf16.mxu0 0
    %265 = vmatpush2.bf16.msra.mxu0 0
    %266 = vmatprep.mubr.bf16.mxu0 0
    %267 = vmatmul.mubr.bf16.gmra.mxu0 %v73
    %v268 = vpop.f32.mrf.mxu0
    %v269 = vadd.f32 0.0, %v268
    %v270 = vpop.f32.mrf.mxu0
    %v271 = vadd.f32 0.0, %v270
    %v272 = vpop.f32.mrf.mxu0
    %v273 = vpop.f32.mrf.mxu0
    %274 = vdwg.mxu0
    %275 = vmatprep.subr.bf16.mxu0 0
    %276 = vmatpush1.bf16.msra.mxu0 %v209
    %277 = vmatprep.subr.bf16.mxu0 0
    %278 = vmatpush1.bf16.msra.mxu0 %v206
    %279 = vmatprep.subr.bf16.mxu0 0
    %280 = vmatpush1.bf16.msra.mxu0 %v203
    %281 = vmatprep.subr.bf16.mxu0 0
    %282 = vmatpush1.bf16.msra.mxu0 %v200
    %283 = vmatprep.subr.bf16.mxu0 0
    %284 = vmatpush1.bf16.msra.mxu0 %v197
    %285 = vmatprep.subr.bf16.mxu0 0
    %286 = vmatpush1.bf16.msra.mxu0 %v194
    %287 = vmatprep.subr.bf16.mxu0 0
    %288 = vmatpush1.bf16.msra.mxu0 %v191
    %289 = vmatprep.subr.bf16.mxu0 0
    %290 = vmatpush1.bf16.msra.mxu0 %v188
    %291 = vmatprep.subr.bf16.mxu0 0
    %292 = vmatpush2.bf16.msra.mxu0 0
    %293 = vmatprep.subr.bf16.mxu0 0
    %294 = vmatpush2.bf16.msra.mxu0 0
    %295 = vmatprep.subr.bf16.mxu0 0
    %296 = vmatpush2.bf16.msra.mxu0 0
    %297 = vmatprep.subr.bf16.mxu0 0
    %298 = vmatpush2.bf16.msra.mxu0 0
    %299 = vmatprep.subr.bf16.mxu0 0
    %300 = vmatpush2.bf16.msra.mxu0 0
    %301 = vmatprep.subr.bf16.mxu0 0
    %302 = vmatpush2.bf16.msra.mxu0 0
    %303 = vmatprep.subr.bf16.mxu0 0
    %304 = vmatpush2.bf16.msra.mxu0 0
    %305 = vmatprep.subr.bf16.mxu0 0
    %306 = vmatpush2.bf16.msra.mxu0 0
    %307 = vmatprep.mubr.bf16.mxu0 0
    %308 = vmatmul.mubr.bf16.gmra.mxu0 %v73
    %v309 = vpop.f32.mrf.mxu0
    %v310 = vadd.f32 0.0, %v309
    %v311 = vpop.f32.mrf.mxu0
    %v312 = vpop.f32.mrf.mxu0
    %v313 = vpop.f32.mrf.mxu0
    %314 = vdwg.mxu0
    %v315 = vld [vmem:[#allocation8] ss:$2 sm:$0x7]
    %s316 = scalar_lea.vmem [#allocation8], 1
    %v317 = vld [vmem:[%s316] ss:$2 sm:$0x7]
    %v318 = vrot.slane %v269, 4
    %v319 = vadd.f32 %v269, %v318
    %v320 = vrot.slane %v319, 2
    %v321 = vadd.f32 %v319, %v320
    %v322 = vrot.slane %v321, 1
    %v323 = vadd.f32 %v321, %v322
    %v324 = vrot.slane %v271, 4
    %v325 = vadd.f32 %v271, %v324
    %v326 = vrot.slane %v325, 2
    %v327 = vadd.f32 %v325, %v326
    %v328 = vrot.slane %v327, 1
    %v329 = vadd.f32 %v327, %v328
    %v330 = vrot.slane %v310, 4
    %v331 = vadd.f32 %v310, %v330
    %v332 = vrot.slane %v331, 2
    %v333 = vadd.f32 %v331, %v332
    %v334 = vrot.slane %v333, 1
    %v335 = vadd.f32 %v333, %v334
    %v336 = vrcp.pop 8.0
    %v337 = vmul.f32 %v323, %v336
    %v338 = vmul.f32 %v329, %v336
    %v339 = vmul.f32 %v335, %v336
    %v340 = vmul.f32 %v269, %v269
    %v341 = vmul.f32 %v271, %v271
    %v342 = vmul.f32 %v310, %v310
    %v343 = vrot.slane %v340, 4
    %v344 = vadd.f32 %v340, %v343
    %v345 = vrot.slane %v344, 2
    %v346 = vadd.f32 %v344, %v345
    %v347 = vrot.slane %v346, 1
    %v348 = vadd.f32 %v346, %v347
    %v349 = vrot.slane %v341, 4
    %v350 = vadd.f32 %v341, %v349
    %v351 = vrot.slane %v350, 2
    %v352 = vadd.f32 %v350, %v351
    %v353 = vrot.slane %v352, 1
    %v354 = vadd.f32 %v352, %v353
    %v355 = vrot.slane %v342, 4
    %v356 = vadd.f32 %v342, %v355
    %v357 = vrot.slane %v356, 2
    %v358 = vadd.f32 %v356, %v357
    %v359 = vrot.slane %v358, 1
    %v360 = vadd.f32 %v358, %v359
    %v361 = vmul.f32 %v348, %v336
    %v362 = vmul.f32 %v354, %v336
    %v363 = vmul.f32 %v360, %v336
    %v364 = vmul.f32 %v337, %v337
    %v365 = vmul.f32 %v338, %v338
    %v366 = vmul.f32 %v339, %v339
    %v367 = vsub.f32 %v361, %v364
    %v368 = vsub.f32 %v362, %v365
    %v369 = vsub.f32 %v363, %v366
    %v370 = vadd.f32 %v367, 1e-05
    %v371 = vadd.f32 %v368, 1e-05
    %v372 = vadd.f32 %v369, 1e-05
    %v373 = vrsqrt.pop %v370
    %v374 = vrsqrt.pop %v371
    %v375 = vrsqrt.pop %v372
    %v379 = vcombine.low %v373, %v374
    %v381 = vunpack.c.l.s4 1966171168
    %v382 = vunpack.c.0.s8 %v381
    %v383 = vlaneseq
    %v384 = vshrl.u32 %v383, 7
    %v385 = vsub.s32 %v382, %v384
    %v386 = vrot.slane %v379, %v385
    %v388 = vunpack.c.l.s4 1966171168
    %v389 = vunpack.c.0.s8 %v388
    %v390 = vlaneseq
    %v391 = vshrl.u32 %v390, 7
    %v392 = vsub.s32 %v389, %v391
    %v393 = vrot.slane %v375, %v392
    %v394 = vcombine.low %v386, %v393
    %v396 = vunpack.c.l.s4 1966171168
    %v397 = vunpack.c.0.s8 %v396
    %v398 = vlaneseq
    %v399 = vshrl.u32 %v398, 7
    %v400 = vsub.s32 %v397, %v399
    %v401 = vrot.slane %v394, %v400
    %v403 = vmul.f32 %v315, %v401
    %v405 = vlaneseq
    %v406 = vshrl.u32 %v405, 7
    %v407 = vsub.s32 0, %v406
    %v408 = vrot.slane %v403, %v407
    %v409 = vlaneseq
    %v410 = vshrl.u32 %v409, 7
    %v411 = vsub.s32 1, %v410
    %v412 = vrot.slane %v403, %v411
    %v413 = vlaneseq
    %v414 = vshrl.u32 %v413, 7
    %v415 = vsub.s32 2, %v414
    %v416 = vrot.slane %v403, %v415
    %v420 = vmul.f32 %v337, %v408
    %v421 = vmul.f32 %v338, %v412
    %v422 = vmul.f32 %v339, %v416
    %v426 = vcombine.low %v420, %v421
    %v428 = vunpack.c.l.s4 1966171168
    %v429 = vunpack.c.0.s8 %v428
    %v430 = vlaneseq
    %v431 = vshrl.u32 %v430, 7
    %v432 = vsub.s32 %v429, %v431
    %v433 = vrot.slane %v426, %v432
    %v435 = vunpack.c.l.s4 1966171168
    %v436 = vunpack.c.0.s8 %v435
    %v437 = vlaneseq
    %v438 = vshrl.u32 %v437, 7
    %v439 = vsub.s32 %v436, %v438
    %v440 = vrot.slane %v422, %v439
    %v441 = vcombine.low %v433, %v440
    %v443 = vunpack.c.l.s4 1966171168
    %v444 = vunpack.c.0.s8 %v443
    %v445 = vlaneseq
    %v446 = vshrl.u32 %v445, 7
    %v447 = vsub.s32 %v444, %v446
    %v448 = vrot.slane %v441, %v447
    %v450 = vsub.f32 %v317, %v448
    %v451 = vmul.f32 %v269, %v408
    %v452 = vmul.f32 %v271, %v412
    %v453 = vmul.f32 %v310, %v416
    %v455 = vlaneseq
    %v456 = vshrl.u32 %v455, 7
    %v457 = vsub.s32 0, %v456
    %v458 = vrot.slane %v450, %v457
    %v459 = vlaneseq
    %v460 = vshrl.u32 %v459, 7
    %v461 = vsub.s32 1, %v460
    %v462 = vrot.slane %v450, %v461
    %v463 = vlaneseq
    %v464 = vshrl.u32 %v463, 7
    %v465 = vsub.s32 2, %v464
    %v466 = vrot.slane %v450, %v465
    %v470 = vadd.f32 %v451, %v458
    %v471 = vadd.f32 %v452, %v462
    %v472 = vadd.f32 %v453, %v466
    %vm473 = vcmp.gt.f32.partialorder %v470, 0.0
    %vm474 = vcmp.gt.f32.partialorder %v471, 0.0
    %vm475 = vcmp.gt.f32.partialorder %v472, 0.0
    %v476 = vmul.f32 %v470, 0.1
    %v477 = vmul.f32 %v471, 0.1
    %v478 = vmul.f32 %v472, 0.1
    %v479 = vsel %vm473, %v470, %v476
    %v480 = vsel %vm474, %v471, %v477
    %v481 = vsel %vm475, %v472, %v478
    %v482 = vpack.c.bf16 %v479, %v479
    %v483 = vpack.c.bf16 %v480, %v480
    %v484 = vpack.c.bf16 %v481, %v481
    %v485 = vld [vmem:[#allocation7] sm:$0xf]
    %v486 = vld [vmem:[#allocation7 + $0x4] sm:$0xf]
    %v487 = vld [vmem:[#allocation7 + $0x8] sm:$0xf]
    %v488 = vld [vmem:[#allocation7 + $0xc] sm:$0xf]
    %v489 = vld [vmem:[#allocation7 + $0x10] sm:$0xf]
    %v490 = vld [vmem:[#allocation7 + $0x14] sm:$0xf]
    %v491 = vld [vmem:[#allocation7 + $0x18] sm:$0xf]
    %v492 = vld [vmem:[#allocation7 + $0x1c] sm:$0xf]
    %v493 = vld [vmem:[#allocation7 + $0x20] sm:$0xf]
    %v494 = vld [vmem:[#allocation7 + $0x24] sm:$0xf]
    %v495 = vld [vmem:[#allocation7 + $0x28] sm:$0xf]
    %v496 = vld [vmem:[#allocation7 + $0x2c] sm:$0xf]
    %v497 = vld [vmem:[#allocation7 + $0x30] sm:$0xf]
    %v498 = vld [vmem:[#allocation7 + $0x34] sm:$0xf]
    %v499 = vld [vmem:[#allocation7 + $0x38] sm:$0xf]
    %v500 = vld [vmem:[#allocation7 + $0x3c] sm:$0xf]
    %v501 = vld [vmem:[#allocation7 + $0x40] sm:$0xf]
    %v502 = vld [vmem:[#allocation7 + $0x44] sm:$0xf]
    %v503 = vld [vmem:[#allocation7 + $0x48] sm:$0xf]
    %v504 = vld [vmem:[#allocation7 + $0x4c] sm:$0xf]
    %v505 = vld [vmem:[#allocation7 + $0x50] sm:$0xf]
    %v506 = vld [vmem:[#allocation7 + $0x54] sm:$0xf]
    %v507 = vld [vmem:[#allocation7 + $0x58] sm:$0xf]
    %v508 = vld [vmem:[#allocation7 + $0x5c] sm:$0xf]
    %v509 = vld [vmem:[#allocation7 + $0x60] sm:$0xf]
    %v510 = vld [vmem:[#allocation7 + $0x64] sm:$0xf]
    %v511 = vld [vmem:[#allocation7 + $0x68] sm:$0xf]
    %v512 = vld [vmem:[#allocation7 + $0x6c] sm:$0xf]
    %v513 = vld [vmem:[#allocation7 + $0x70] sm:$0xf]
    %v514 = vld [vmem:[#allocation7 + $0x74] sm:$0xf]
    %v515 = vld [vmem:[#allocation7 + $0x78] sm:$0xf]
    %v516 = vld [vmem:[#allocation7 + $0x7c] sm:$0xf]
    %v517 = vld [vmem:[#allocation7 + $0x80] sm:$0xf]
    %v518 = vld [vmem:[#allocation7 + $0x84] sm:$0xf]
    %v519 = vld [vmem:[#allocation7 + $0x88] sm:$0xf]
    %v520 = vld [vmem:[#allocation7 + $0x8c] sm:$0xf]
    %v521 = vld [vmem:[#allocation7 + $0x90] sm:$0xf]
    %v522 = vld [vmem:[#allocation7 + $0x94] sm:$0xf]
    %v523 = vld [vmem:[#allocation7 + $0x98] sm:$0xf]
    %v524 = vld [vmem:[#allocation7 + $0x9c] sm:$0xf]
    %v525 = vld [vmem:[#allocation7 + $0xa0] sm:$0xf]
    %v526 = vld [vmem:[#allocation7 + $0xa4] sm:$0xf]
    %v527 = vld [vmem:[#allocation7 + $0xa8] sm:$0xf]
    %v528 = vld [vmem:[#allocation7 + $0xac] sm:$0xf]
    %v529 = vld [vmem:[#allocation7 + $0xb0] sm:$0xf]
    %v530 = vld [vmem:[#allocation7 + $0xb4] sm:$0xf]
    %v531 = vld [vmem:[#allocation7 + $0xb8] sm:$0xf]
    %v532 = vld [vmem:[#allocation7 + $0xbc] sm:$0xf]
    %v581 = vunpack.c.l.b16 %v485
    %v582 = vunpack.c.l.b16 %v486
    %v583 = vunpack.c.l.b16 %v487
    %v584 = vunpack.c.l.b16 %v488
    %v585 = vunpack.c.l.b16 %v489
    %v586 = vunpack.c.l.b16 %v490
    %v587 = vunpack.c.l.b16 %v491
    %v588 = vunpack.c.l.b16 %v492
    %v589 = vunpack.c.l.b16 %v493
    %v590 = vunpack.c.l.b16 %v494
    %v591 = vunpack.c.l.b16 %v495
    %v592 = vunpack.c.l.b16 %v496
    %v593 = vunpack.c.l.b16 %v497
    %v594 = vunpack.c.l.b16 %v498
    %v595 = vunpack.c.l.b16 %v499
    %v596 = vunpack.c.l.b16 %v500
    %v597 = vunpack.c.l.b16 %v501
    %v598 = vunpack.c.l.b16 %v502
    %v599 = vunpack.c.l.b16 %v503
    %v600 = vunpack.c.l.b16 %v504
    %v601 = vunpack.c.l.b16 %v505
    %v602 = vunpack.c.l.b16 %v506
    %v603 = vunpack.c.l.b16 %v507
    %v604 = vunpack.c.l.b16 %v508
    %v605 = vunpack.c.l.b16 %v509
    %v606 = vunpack.c.l.b16 %v510
    %v607 = vunpack.c.l.b16 %v511
    %v608 = vunpack.c.l.b16 %v512
    %v609 = vunpack.c.l.b16 %v513
    %v610 = vunpack.c.l.b16 %v514
    %v611 = vunpack.c.l.b16 %v515
    %v612 = vunpack.c.l.b16 %v516
    %v613 = vunpack.c.l.b16 %v517
    %v614 = vunpack.c.l.b16 %v518
    %v615 = vunpack.c.l.b16 %v519
    %v616 = vunpack.c.l.b16 %v520
    %v617 = vunpack.c.l.b16 %v521
    %v618 = vunpack.c.l.b16 %v522
    %v619 = vunpack.c.l.b16 %v523
    %v620 = vunpack.c.l.b16 %v524
    %v621 = vunpack.c.l.b16 %v525
    %v622 = vunpack.c.l.b16 %v526
    %v623 = vunpack.c.l.b16 %v527
    %v624 = vunpack.c.l.b16 %v528
    %v625 = vunpack.c.l.b16 %v529
    %v626 = vunpack.c.l.b16 %v530
    %v627 = vunpack.c.l.b16 %v531
    %v628 = vunpack.c.l.b16 %v532
    %v629 = vpack.c.b16 %v582, %v581
    %v630 = vpack.c.b16 %v584, %v583
    %v631 = vpack.c.b16 %v586, %v585
    %v632 = vpack.c.b16 %v588, %v587
    %v633 = vpack.c.b16 %v590, %v589
    %v634 = vpack.c.b16 %v592, %v591
    %v635 = vpack.c.b16 %v594, %v593
    %v636 = vpack.c.b16 %v596, %v595
    %v637 = vpack.c.b16 %v598, %v597
    %v638 = vpack.c.b16 %v600, %v599
    %v639 = vpack.c.b16 %v602, %v601
    %v640 = vpack.c.b16 %v604, %v603
    %v641 = vpack.c.b16 %v606, %v605
    %v642 = vpack.c.b16 %v608, %v607
    %v643 = vpack.c.b16 %v610, %v609
    %v644 = vpack.c.b16 %v612, %v611
    %v645 = vpack.c.b16 %v614, %v613
    %v646 = vpack.c.b16 %v616, %v615
    %v647 = vpack.c.b16 %v618, %v617
    %v648 = vpack.c.b16 %v620, %v619
    %v649 = vpack.c.b16 %v622, %v621
    %v650 = vpack.c.b16 %v624, %v623
    %v651 = vpack.c.b16 %v626, %v625
    %v652 = vpack.c.b16 %v628, %v627
    %677 = vmatprep.subr.bf16.mxu0 0
    %678 = vmatpush1.bf16.msra.mxu0 %v636
    %679 = vmatprep.subr.bf16.mxu0 0
    %680 = vmatpush1.bf16.msra.mxu0 %v635
    %681 = vmatprep.subr.bf16.mxu0 0
    %682 = vmatpush1.bf16.msra.mxu0 %v634
    %683 = vmatprep.subr.bf16.mxu0 0
    %684 = vmatpush1.bf16.msra.mxu0 %v633
    %685 = vmatprep.subr.bf16.mxu0 0
    %686 = vmatpush1.bf16.msra.mxu0 %v632
    %687 = vmatprep.subr.bf16.mxu0 0
    %688 = vmatpush1.bf16.msra.mxu0 %v631
    %689 = vmatprep.subr.bf16.mxu0 0
    %690 = vmatpush1.bf16.msra.mxu0 %v630
    %691 = vmatprep.subr.bf16.mxu0 0
    %692 = vmatpush1.bf16.msra.mxu0 %v629
    %693 = vmatprep.subr.bf16.mxu0 0
    %694 = vmatpush2.bf16.msra.mxu0 %v644
    %695 = vmatprep.subr.bf16.mxu0 0
    %696 = vmatpush2.bf16.msra.mxu0 %v643
    %697 = vmatprep.subr.bf16.mxu0 0
    %698 = vmatpush2.bf16.msra.mxu0 %v642
    %699 = vmatprep.subr.bf16.mxu0 0
    %700 = vmatpush2.bf16.msra.mxu0 %v641
    %701 = vmatprep.subr.bf16.mxu0 0
    %702 = vmatpush2.bf16.msra.mxu0 %v640
    %703 = vmatprep.subr.bf16.mxu0 0
    %704 = vmatpush2.bf16.msra.mxu0 %v639
    %705 = vmatprep.subr.bf16.mxu0 0
    %706 = vmatpush2.bf16.msra.mxu0 %v638
    %707 = vmatprep.subr.bf16.mxu0 0
    %708 = vmatpush2.bf16.msra.mxu0 %v637
    %709 = vmatprep.mubr.bf16.mxu0 %v483
    %710 = vmatmul.mubr.bf16.gmra.mxu0 %v482
    %v711 = vpop.f32.mrf.mxu0
    %v712 = vadd.f32 0.0, %v711
    %v713 = vpop.f32.mrf.mxu0
    %v714 = vpop.f32.mrf.mxu0
    %v715 = vpop.f32.mrf.mxu0
    %716 = vdwg.mxu0
    %717 = vmatprep.subr.bf16.mxu0 0
    %718 = vmatpush1.bf16.msra.mxu0 %v652
    %719 = vmatprep.subr.bf16.mxu0 0
    %720 = vmatpush1.bf16.msra.mxu0 %v651
    %721 = vmatprep.subr.bf16.mxu0 0
    %722 = vmatpush1.bf16.msra.mxu0 %v650
    %723 = vmatprep.subr.bf16.mxu0 0
    %724 = vmatpush1.bf16.msra.mxu0 %v649
    %725 = vmatprep.subr.bf16.mxu0 0
    %726 = vmatpush1.bf16.msra.mxu0 %v648
    %727 = vmatprep.subr.bf16.mxu0 0
    %728 = vmatpush1.bf16.msra.mxu0 %v647
    %729 = vmatprep.subr.bf16.mxu0 0
    %730 = vmatpush1.bf16.msra.mxu0 %v646
    %731 = vmatprep.subr.bf16.mxu0 0
    %732 = vmatpush1.bf16.msra.mxu0 %v645
    %733 = vmatprep.subr.bf16.mxu0 0
    %734 = vmatpush2.bf16.msra.mxu0 0
    %735 = vmatprep.subr.bf16.mxu0 0
    %736 = vmatpush2.bf16.msra.mxu0 0
    %737 = vmatprep.subr.bf16.mxu0 0
    %738 = vmatpush2.bf16.msra.mxu0 0
    %739 = vmatprep.subr.bf16.mxu0 0
    %740 = vmatpush2.bf16.msra.mxu0 0
    %741 = vmatprep.subr.bf16.mxu0 0
    %742 = vmatpush2.bf16.msra.mxu0 0
    %743 = vmatprep.subr.bf16.mxu0 0
    %744 = vmatpush2.bf16.msra.mxu0 0
    %745 = vmatprep.subr.bf16.mxu0 0
    %746 = vmatpush2.bf16.msra.mxu0 0
    %747 = vmatprep.subr.bf16.mxu0 0
    %748 = vmatpush2.bf16.msra.mxu0 0
    %749 = vmatprep.mubr.bf16.mxu0 0
    %750 = vmatmul.mubr.bf16.gmra.mxu0 %v484
    %v751 = vpop.f32.mrf.mxu0
    %v752 = vadd.f32 %v712, %v751
    %v753 = vpop.f32.mrf.mxu0
    %v754 = vpop.f32.mrf.mxu0
    %v755 = vpop.f32.mrf.mxu0
    %756 = vdwg.mxu0
    %v757 = vld [vmem:[#allocation8 + $0x6] sm:$0x1]
    %v758 = vld [vmem:[#allocation8 + $0x7] sm:$0x1]
    %v759 = vrot.slane %v752, 4
    %v760 = vadd.f32 %v752, %v759
    %v761 = vrot.slane %v760, 2
    %v762 = vadd.f32 %v760, %v761
    %v763 = vrot.slane %v762, 1
    %v764 = vadd.f32 %v762, %v763
    %v765 = vmul.f32 %v764, %v336
    %v766 = vmul.f32 %v752, %v752
    %v767 = vrot.slane %v766, 4
    %v768 = vadd.f32 %v766, %v767
    %v769 = vrot.slane %v768, 2
    %v770 = vadd.f32 %v768, %v769
    %v771 = vrot.slane %v770, 1
    %v772 = vadd.f32 %v770, %v771
    %v773 = vmul.f32 %v772, %v336
    %v774 = vmul.f32 %v765, %v765
    %v775 = vsub.f32 %v773, %v774
    %v776 = vadd.f32 %v775, 1e-05
    %v777 = vrsqrt.pop %v776
    %v778 = vmul.f32 %v757, %v777
    %v779 = vmul.f32 %v765, %v778
    %v780 = vsub.f32 %v758, %v779
    %v781 = vlaneseq
    %v782 = vshrl.u32 %v781, 7
    %v783 = vsub.s32 0, %v782
    %v784 = vrot.slane %v778, %v783
    %v785 = vmul.f32 %v752, %v784
    %v786 = vlaneseq
    %v787 = vshrl.u32 %v786, 7
    %v788 = vsub.s32 0, %v787
    %v789 = vrot.slane %v780, %v788
    %v790 = vadd.f32 %v785, %v789
    %vm791 = vcmp.gt.f32.partialorder %v790, 0.0
    %v792 = vmul.f32 %v790, 0.1
    %v793 = vsel %vm791, %v790, %v792
    %v794 = vpack.c.bf16 %v793, %v793
    %v795 = vld [vmem:[#allocation7 + $0xc0] sm:$0xf]
    %v796 = vld [vmem:[#allocation7 + $0xc4] sm:$0xf]
    %v797 = vld [vmem:[#allocation7 + $0xc8] sm:$0xf]
    %v798 = vld [vmem:[#allocation7 + $0xcc] sm:$0xf]
    %v799 = vld [vmem:[#allocation7 + $0xd0] sm:$0xf]
    %v800 = vld [vmem:[#allocation7 + $0xd4] sm:$0xf]
    %v801 = vld [vmem:[#allocation7 + $0xd8] sm:$0xf]
    %v802 = vld [vmem:[#allocation7 + $0xdc] sm:$0xf]
    %v803 = vld [vmem:[#allocation7 + $0xe0] sm:$0xf]
    %v804 = vld [vmem:[#allocation7 + $0xe4] sm:$0xf]
    %v805 = vld [vmem:[#allocation7 + $0xe8] sm:$0xf]
    %v806 = vld [vmem:[#allocation7 + $0xec] sm:$0xf]
    %v807 = vld [vmem:[#allocation7 + $0xf0] sm:$0xf]
    %v808 = vld [vmem:[#allocation7 + $0xf4] sm:$0xf]
    %v809 = vld [vmem:[#allocation7 + $0xf8] sm:$0xf]
    %v810 = vld [vmem:[#allocation7 + $0xfc] sm:$0xf]
    %v811 = vld [vmem:[#allocation8 + $0x8] sm:$0x1]
    %v812 = vlaneseq
    %v813 = vshrl.u32 %v812, 7
    %v814 = vsub.s32 0, %v813
    %v815 = vrot.slane %v811, %v814
    %v832 = vunpack.c.l.b16 %v795
    %v833 = vunpack.c.l.b16 %v796
    %v834 = vunpack.c.l.b16 %v797
    %v835 = vunpack.c.l.b16 %v798
    %v836 = vunpack.c.l.b16 %v799
    %v837 = vunpack.c.l.b16 %v800
    %v838 = vunpack.c.l.b16 %v801
    %v839 = vunpack.c.l.b16 %v802
    %v840 = vunpack.c.l.b16 %v803
    %v841 = vunpack.c.l.b16 %v804
    %v842 = vunpack.c.l.b16 %v805
    %v843 = vunpack.c.l.b16 %v806
    %v844 = vunpack.c.l.b16 %v807
    %v845 = vunpack.c.l.b16 %v808
    %v846 = vunpack.c.l.b16 %v809
    %v847 = vunpack.c.l.b16 %v810
    %v848 = vpack.c.b16 %v833, %v832
    %v849 = vpack.c.b16 %v835, %v834
    %v850 = vpack.c.b16 %v837, %v836
    %v851 = vpack.c.b16 %v839, %v838
    %v852 = vpack.c.b16 %v841, %v840
    %v853 = vpack.c.b16 %v843, %v842
    %v854 = vpack.c.b16 %v845, %v844
    %v855 = vpack.c.b16 %v847, %v846
    %864 = vmatprep.subr.bf16.mxu0 0
    %865 = vmatpush1.bf16.msra.mxu0 %v855
    %866 = vmatprep.subr.bf16.mxu0 0
    %867 = vmatpush1.bf16.msra.mxu0 %v854
    %868 = vmatprep.subr.bf16.mxu0 0
    %869 = vmatpush1.bf16.msra.mxu0 %v853
    %870 = vmatprep.subr.bf16.mxu0 0
    %871 = vmatpush1.bf16.msra.mxu0 %v852
    %872 = vmatprep.subr.bf16.mxu0 0
    %873 = vmatpush1.bf16.msra.mxu0 %v851
    %874 = vmatprep.subr.bf16.mxu0 0
    %875 = vmatpush1.bf16.msra.mxu0 %v850
    %876 = vmatprep.subr.bf16.mxu0 0
    %877 = vmatpush1.bf16.msra.mxu0 %v849
    %878 = vmatprep.subr.bf16.mxu0 0
    %879 = vmatpush1.bf16.msra.mxu0 %v848
    %880 = vmatprep.subr.bf16.mxu0 0
    %881 = vmatpush2.bf16.msra.mxu0 0
    %882 = vmatprep.subr.bf16.mxu0 0
    %883 = vmatpush2.bf16.msra.mxu0 0
    %884 = vmatprep.subr.bf16.mxu0 0
    %885 = vmatpush2.bf16.msra.mxu0 0
    %886 = vmatprep.subr.bf16.mxu0 0
    %887 = vmatpush2.bf16.msra.mxu0 0
    %888 = vmatprep.subr.bf16.mxu0 0
    %889 = vmatpush2.bf16.msra.mxu0 0
    %890 = vmatprep.subr.bf16.mxu0 0
    %891 = vmatpush2.bf16.msra.mxu0 0
    %892 = vmatprep.subr.bf16.mxu0 0
    %893 = vmatpush2.bf16.msra.mxu0 0
    %894 = vmatprep.subr.bf16.mxu0 0
    %895 = vmatpush2.bf16.msra.mxu0 0
    %896 = vmatprep.mubr.bf16.mxu0 0
    %897 = vmatmul.mubr.bf16.gmra.mxu0 %v794
    %v898 = vpop.f32.mrf.mxu0
    %v899 = vadd.f32 %v815, %v898
    %v900 = vpop.f32.mrf.mxu0
    %v901 = vpop.f32.mrf.mxu0
    %v902 = vpop.f32.mrf.mxu0
    %903 = vdwg.mxu0
    %vm904 = vcmask 162816
    %905 = vst.msk [vmem:[#allocation10] sm:$0xff] %vm904, %v899
    // Predicated region
    $region34: #{tpu_custom_call.1} parent=1 // pred_check
      _
    $region35: #{tpu_custom_call.1} parent=1 // pred_check_branch
      %907 = sbr.rel (0) target = $region37
    $region36: #{tpu_custom_call.1} parent=1 // pred_region
      %s909 = ssub.s32 128, 128
      %910 = vsyncadd [#allocation4], %s909
      %s912 = sshll.u32 [#allocation10], 4
      %s913 = int_to_ptr.vmem [resolvable:$true] %s912
      %915 = dma.vmem_to_hbm [thread:$0]  %s913, 128, %s4, [#allocation4]
    $region37: #{tpu_custom_call.1} parent=1 // pred_fallthru
      _
    // Predicated region
    $region38: #{tpu_custom_call.1} parent=1 // pred_check
      _
    $region39: #{tpu_custom_call.1} parent=1 // pred_check_branch
      %917 = sbr.rel (0) target = $region41
    $region40: #{tpu_custom_call.1} parent=1 // pred_region
      %918 = dma.done [#allocation4], 128
    $region41: #{tpu_custom_call.1} parent=1 // pred_fallthru
      _
    %919 = vsyncpa [#allocation3], 1
    %920 = vsyncpa [#allocation6], 1
    %921 = vsyncpa [#allocation9], 1
    %922 = vsyncpa [#allocation4], 1

</llo_original>
